<compile_context>
chip_gen: v5e
topology: v5e:2x2
jax: 0.10.0
libtpu: 0.0.40
codegen_flags: <defaults>
</compile_context>

<pallas_src>
import functools

import jax
import jax.numpy as jnp
from jax import lax
from jax.experimental import pallas as pl
from jax.experimental.pallas import tpu as pltpu


def _round_up(x, m):
    return (x + m - 1) // m * m


def _embedding_bag_sum_kernel(off_ref, idx_ref, w_ref, o_ref, *,
                              bags_per_block, vocab_size):
    """EmbeddingBag(mode='sum') forward, one block of `bags_per_block` bags.

    off_ref : SMEM (B_pad+1,)       int32 -- bag starts, sentinel end = L
    idx_ref : SMEM (L,)             int32 -- flattened bag contents
    w_ref   : VMEM (V_pad, D_pad)   f32   -- zero-padded embedding table
    o_ref   : VMEM (bags_per_block, D_pad) f32 -- per-bag sums for this block
    """
    blk = pl.program_id(0)
    d_pad = w_ref.shape[1]

    rows = []
    for bb in range(bags_per_block):           # static unroll: 8 bags / block
        b = blk * bags_per_block + bb
        start = off_ref[b]                      # dynamic SMEM scalar reads
        end = off_ref[b + 1]                    # padded bags: start == end

        def body(l, acc):
            idx = idx_ref[l]
            # Clip keeps the dynamic gather in-bounds (no runtime bounds check
            # on TPU); PyTorch would raise for out-of-range indices.
            safe_idx = jnp.clip(idx, 0, vocab_size - 1)
            row = w_ref[pl.ds(safe_idx, 1), :]  # (1, d_pad) sublane gather
            return acc + row.astype(jnp.float32)

        acc = lax.fori_loop(start, end, body,
                            jnp.zeros((1, d_pad), jnp.float32))
        rows.append(acc)

    # Single lane-dense, unmasked (8, 128) store per block.
    o_ref[...] = jnp.concatenate(rows, axis=0).astype(o_ref.dtype)


def embedding_bag_sum(indices, offsets, weight, *, bags_per_block=8):
    """nn.EmbeddingBag(V, D, mode='sum') forward. indices: (L,), offsets: (B,).

    PyTorch contract assumed: offsets non-decreasing, offsets[0] == 0.
    """
    (num_idx,) = indices.shape
    (num_bags,) = offsets.shape
    vocab, dim = weight.shape

    d_pad = _round_up(dim, 128)                 # lane-dense working layout
    v_pad = _round_up(vocab, 8)                 # sublane-aligned table rows
    b_pad = _round_up(num_bags, bags_per_block)
    nblk = b_pad // bags_per_block

    w_pad = jnp.zeros((v_pad, d_pad), weight.dtype).at[:vocab, :dim].set(weight)
    idx = indices.astype(jnp.int32)

    # Extended offsets: off_ext[b] = bag start, off_ext[b+1] = bag end.
    # Entries past the real bags (and the final sentinel) are L, so padded
    # bags run zero loop iterations and produce zero rows.
    off_ext = (jnp.full((b_pad + 1,), num_idx, jnp.int32)
               .at[:num_bags].set(offsets.astype(jnp.int32)))

    kernel = functools.partial(_embedding_bag_sum_kernel,
                               bags_per_block=bags_per_block,
                               vocab_size=vocab)

    itemsize = jnp.dtype(weight.dtype).itemsize
    bytes_accessed = (v_pad * d_pad * itemsize          # table DMA (once)
                      + num_idx * 4 + (b_pad + 1) * 4   # SMEM control data
                      + b_pad * d_pad * itemsize)       # output writeback

    grid_spec = pltpu.PrefetchScalarGridSpec(
        num_scalar_prefetch=2,                  # off_ext, idx -> SMEM
        grid=(nblk,),
        in_specs=[
            # Tiny table, VMEM-resident, same block every step.
            pl.BlockSpec((v_pad, d_pad), lambda i, off, idx: (0, 0)),
        ],
        out_specs=pl.BlockSpec((bags_per_block, d_pad),
                               lambda i, off, idx: (i, 0)),
    )

    out_pad = pl.pallas_call(
        kernel,
        out_shape=jax.ShapeDtypeStruct((b_pad, d_pad), weight.dtype),
        grid_spec=grid_spec,
        cost_estimate=pl.CostEstimate(
            flops=num_idx * d_pad,              # one add per gathered element
            transcendentals=0,
            bytes_accessed=bytes_accessed,
        ),
        compiler_params=pltpu.CompilerParams(
            # Bag-block axis is independent -> megacore/2-TC sharding on v7x.
            dimension_semantics=("parallel",),
            # Table (8 KiB) + double-buffered output blocks: far below the
            # 32 MiB scoped default and v7x's 64 MiB physical VMEM.
            vmem_limit_bytes=32 * 1024 * 1024,
        ),
    )(off_ext, idx, w_pad)

    return out_pad[:num_bags, :dim]


if __name__ == "__main__":
    key = jax.random.PRNGKey(0)
    k_w, k_i = jax.random.split(key)

    V, D = 10, 3            # nn.EmbeddingBag(10, 3, mode='sum')
    L, B = 8, 2             # 8 indices split into 2 bags

    weight = jax.random.normal(k_w, (V, D), dtype=jnp.float32)
    indices = jax.random.randint(k_i, (L,), 0, V, dtype=jnp.int32)
    offsets = jnp.array([0, 4], dtype=jnp.int32)

    # PyTorch EmbeddingBag contract.
    assert int(offsets[0]) == 0
    assert bool(jnp.all(offsets[1:] >= offsets[:-1]))

    out = embedding_bag_sum(indices, offsets, weight)
    out = jax.block_until_ready(out)

    # Pure-JAX reference: per-bag sum of gathered embedding rows.
    gathered = weight[indices]                       # (L, D)
    bag_id = jnp.sum(
        (jnp.arange(L)[None, :] >= offsets[:, None]).astype(jnp.int32), axis=0
    ) - 1                                            # (L,)
    ref = jax.ops.segment_sum(gathered, bag_id, num_segments=B)

    assert out.shape == (B, D) and out.dtype == jnp.float32
    assert jnp.allclose(out, ref, atol=1e-5, rtol=1e-5), (out, ref)
    print("KERNEL_OK")
</pallas_src>

<mosaic_0001>
module attributes {stable_mosaic.version = 11 : i64} {
  func.func @_embedding_bag_sum_kernel(%arg0: i32, %arg1: memref<9xi32, #tpu.memory_space<smem>>, %arg2: memref<8xi32, #tpu.memory_space<smem>>, %arg3: memref<16x128xf32, #tpu.memory_space<vmem>>, %arg4: memref<8x128xf32, #tpu.memory_space<vmem>>) attributes {dimension_semantics = [#tpu.dimension_semantics<parallel>], iteration_bounds = array<i64: 1>, scalar_prefetch = 2 : i64, scratch_operands = 0 : i64, tpu.core_type = #tpu.core_type<tc>, window_params = [{pipeline_mode = #tpu.pipeline_mode<synchronous>, transform_indices = @transform_0, window_bounds = array<i64: 16, 128>}, {transform_indices = @transform_1, window_bounds = array<i64: 8, 128>}]} {
    %c8_i32 = arith.constant 8 : i32
    %0 = arith.muli %arg0, %c8_i32 : i32
    %c0_i32 = arith.constant 0 : i32
    %1 = arith.addi %0, %c0_i32 : i32
    %2 = arith.index_cast %1 : i32 to index
    %3 = memref.load %arg1[%2] : memref<9xi32, #tpu.memory_space<smem>>
    %c1_i32 = arith.constant 1 : i32
    %4 = arith.addi %1, %c1_i32 : i32
    %5 = arith.index_cast %4 : i32 to index
    %6 = memref.load %arg1[%5] : memref<9xi32, #tpu.memory_space<smem>>
    %cst = arith.constant 0.000000e+00 : f32
    %7 = vector.broadcast %cst : f32 to vector<1x128xf32>
    %8 = arith.subi %6, %3 : i32
    %9 = arith.addi %3, %8 : i32
    %c1_i32_0 = arith.constant 1 : i32
    %10 = scf.for %arg5 = %3 to %9 step %c1_i32_0 iter_args(%arg6 = %7) -> (vector<1x128xf32>)  : i32 {
      %90 = arith.index_cast %arg5 : i32 to index
      %91 = memref.load %arg2[%90] : memref<8xi32, #tpu.memory_space<smem>>
      %c0_i32_31 = arith.constant 0 : i32
      %c9_i32 = arith.constant 9 : i32
      %92 = arith.maxsi %c0_i32_31, %91 : i32
      %93 = arith.minsi %c9_i32, %92 : i32
      %94 = arith.index_cast %93 : i32 to index
      %c0_32 = arith.constant 0 : index
      %95 = vector.load %arg3[%94, %c0_32] : memref<16x128xf32, #tpu.memory_space<vmem>>, vector<1x128xf32>
      %96 = arith.addf %arg6, %95 : vector<1x128xf32>
      scf.yield %96 : vector<1x128xf32>
    }
    %c8_i32_1 = arith.constant 8 : i32
    %11 = arith.muli %arg0, %c8_i32_1 : i32
    %c1_i32_2 = arith.constant 1 : i32
    %12 = arith.addi %11, %c1_i32_2 : i32
    %13 = arith.index_cast %12 : i32 to index
    %14 = memref.load %arg1[%13] : memref<9xi32, #tpu.memory_space<smem>>
    %c1_i32_3 = arith.constant 1 : i32
    %15 = arith.addi %12, %c1_i32_3 : i32
    %16 = arith.index_cast %15 : i32 to index
    %17 = memref.load %arg1[%16] : memref<9xi32, #tpu.memory_space<smem>>
    %cst_4 = arith.constant 0.000000e+00 : f32
    %18 = vector.broadcast %cst_4 : f32 to vector<1x128xf32>
    %19 = arith.subi %17, %14 : i32
    %20 = arith.addi %14, %19 : i32
    %c1_i32_5 = arith.constant 1 : i32
    %21 = scf.for %arg5 = %14 to %20 step %c1_i32_5 iter_args(%arg6 = %18) -> (vector<1x128xf32>)  : i32 {
      %90 = arith.index_cast %arg5 : i32 to index
      %91 = memref.load %arg2[%90] : memref<8xi32, #tpu.memory_space<smem>>
      %c0_i32_31 = arith.constant 0 : i32
      %c9_i32 = arith.constant 9 : i32
      %92 = arith.maxsi %c0_i32_31, %91 : i32
      %93 = arith.minsi %c9_i32, %92 : i32
      %94 = arith.index_cast %93 : i32 to index
      %c0_32 = arith.constant 0 : index
      %95 = vector.load %arg3[%94, %c0_32] : memref<16x128xf32, #tpu.memory_space<vmem>>, vector<1x128xf32>
      %96 = arith.addf %arg6, %95 : vector<1x128xf32>
      scf.yield %96 : vector<1x128xf32>
    }
    %c8_i32_6 = arith.constant 8 : i32
    %22 = arith.muli %arg0, %c8_i32_6 : i32
    %c2_i32 = arith.constant 2 : i32
    %23 = arith.addi %22, %c2_i32 : i32
    %24 = arith.index_cast %23 : i32 to index
    %25 = memref.load %arg1[%24] : memref<9xi32, #tpu.memory_space<smem>>
    %c1_i32_7 = arith.constant 1 : i32
    %26 = arith.addi %23, %c1_i32_7 : i32
    %27 = arith.index_cast %26 : i32 to index
    %28 = memref.load %arg1[%27] : memref<9xi32, #tpu.memory_space<smem>>
    %cst_8 = arith.constant 0.000000e+00 : f32
    %29 = vector.broadcast %cst_8 : f32 to vector<1x128xf32>
    %30 = arith.subi %28, %25 : i32
    %31 = arith.addi %25, %30 : i32
    %c1_i32_9 = arith.constant 1 : i32
    %32 = scf.for %arg5 = %25 to %31 step %c1_i32_9 iter_args(%arg6 = %29) -> (vector<1x128xf32>)  : i32 {
      %90 = arith.index_cast %arg5 : i32 to index
      %91 = memref.load %arg2[%90] : memref<8xi32, #tpu.memory_space<smem>>
      %c0_i32_31 = arith.constant 0 : i32
      %c9_i32 = arith.constant 9 : i32
      %92 = arith.maxsi %c0_i32_31, %91 : i32
      %93 = arith.minsi %c9_i32, %92 : i32
      %94 = arith.index_cast %93 : i32 to index
      %c0_32 = arith.constant 0 : index
      %95 = vector.load %arg3[%94, %c0_32] : memref<16x128xf32, #tpu.memory_space<vmem>>, vector<1x128xf32>
      %96 = arith.addf %arg6, %95 : vector<1x128xf32>
      scf.yield %96 : vector<1x128xf32>
    }
    %c8_i32_10 = arith.constant 8 : i32
    %33 = arith.muli %arg0, %c8_i32_10 : i32
    %c3_i32 = arith.constant 3 : i32
    %34 = arith.addi %33, %c3_i32 : i32
    %35 = arith.index_cast %34 : i32 to index
    %36 = memref.load %arg1[%35] : memref<9xi32, #tpu.memory_space<smem>>
    %c1_i32_11 = arith.constant 1 : i32
    %37 = arith.addi %34, %c1_i32_11 : i32
    %38 = arith.index_cast %37 : i32 to index
    %39 = memref.load %arg1[%38] : memref<9xi32, #tpu.memory_space<smem>>
    %cst_12 = arith.constant 0.000000e+00 : f32
    %40 = vector.broadcast %cst_12 : f32 to vector<1x128xf32>
    %41 = arith.subi %39, %36 : i32
    %42 = arith.addi %36, %41 : i32
    %c1_i32_13 = arith.constant 1 : i32
    %43 = scf.for %arg5 = %36 to %42 step %c1_i32_13 iter_args(%arg6 = %40) -> (vector<1x128xf32>)  : i32 {
      %90 = arith.index_cast %arg5 : i32 to index
      %91 = memref.load %arg2[%90] : memref<8xi32, #tpu.memory_space<smem>>
      %c0_i32_31 = arith.constant 0 : i32
      %c9_i32 = arith.constant 9 : i32
      %92 = arith.maxsi %c0_i32_31, %91 : i32
      %93 = arith.minsi %c9_i32, %92 : i32
      %94 = arith.index_cast %93 : i32 to index
      %c0_32 = arith.constant 0 : index
      %95 = vector.load %arg3[%94, %c0_32] : memref<16x128xf32, #tpu.memory_space<vmem>>, vector<1x128xf32>
      %96 = arith.addf %arg6, %95 : vector<1x128xf32>
      scf.yield %96 : vector<1x128xf32>
    }
    %c8_i32_14 = arith.constant 8 : i32
    %44 = arith.muli %arg0, %c8_i32_14 : i32
    %c4_i32 = arith.constant 4 : i32
    %45 = arith.addi %44, %c4_i32 : i32
    %46 = arith.index_cast %45 : i32 to index
    %47 = memref.load %arg1[%46] : memref<9xi32, #tpu.memory_space<smem>>
    %c1_i32_15 = arith.constant 1 : i32
    %48 = arith.addi %45, %c1_i32_15 : i32
    %49 = arith.index_cast %48 : i32 to index
    %50 = memref.load %arg1[%49] : memref<9xi32, #tpu.memory_space<smem>>
    %cst_16 = arith.constant 0.000000e+00 : f32
    %51 = vector.broadcast %cst_16 : f32 to vector<1x128xf32>
    %52 = arith.subi %50, %47 : i32
    %53 = arith.addi %47, %52 : i32
    %c1_i32_17 = arith.constant 1 : i32
    %54 = scf.for %arg5 = %47 to %53 step %c1_i32_17 iter_args(%arg6 = %51) -> (vector<1x128xf32>)  : i32 {
      %90 = arith.index_cast %arg5 : i32 to index
      %91 = memref.load %arg2[%90] : memref<8xi32, #tpu.memory_space<smem>>
      %c0_i32_31 = arith.constant 0 : i32
      %c9_i32 = arith.constant 9 : i32
      %92 = arith.maxsi %c0_i32_31, %91 : i32
      %93 = arith.minsi %c9_i32, %92 : i32
      %94 = arith.index_cast %93 : i32 to index
      %c0_32 = arith.constant 0 : index
      %95 = vector.load %arg3[%94, %c0_32] : memref<16x128xf32, #tpu.memory_space<vmem>>, vector<1x128xf32>
      %96 = arith.addf %arg6, %95 : vector<1x128xf32>
      scf.yield %96 : vector<1x128xf32>
    }
    %c8_i32_18 = arith.constant 8 : i32
    %55 = arith.muli %arg0, %c8_i32_18 : i32
    %c5_i32 = arith.constant 5 : i32
    %56 = arith.addi %55, %c5_i32 : i32
    %57 = arith.index_cast %56 : i32 to index
    %58 = memref.load %arg1[%57] : memref<9xi32, #tpu.memory_space<smem>>
    %c1_i32_19 = arith.constant 1 : i32
    %59 = arith.addi %56, %c1_i32_19 : i32
    %60 = arith.index_cast %59 : i32 to index
    %61 = memref.load %arg1[%60] : memref<9xi32, #tpu.memory_space<smem>>
    %cst_20 = arith.constant 0.000000e+00 : f32
    %62 = vector.broadcast %cst_20 : f32 to vector<1x128xf32>
    %63 = arith.subi %61, %58 : i32
    %64 = arith.addi %58, %63 : i32
    %c1_i32_21 = arith.constant 1 : i32
    %65 = scf.for %arg5 = %58 to %64 step %c1_i32_21 iter_args(%arg6 = %62) -> (vector<1x128xf32>)  : i32 {
      %90 = arith.index_cast %arg5 : i32 to index
      %91 = memref.load %arg2[%90] : memref<8xi32, #tpu.memory_space<smem>>
      %c0_i32_31 = arith.constant 0 : i32
      %c9_i32 = arith.constant 9 : i32
      %92 = arith.maxsi %c0_i32_31, %91 : i32
      %93 = arith.minsi %c9_i32, %92 : i32
      %94 = arith.index_cast %93 : i32 to index
      %c0_32 = arith.constant 0 : index
      %95 = vector.load %arg3[%94, %c0_32] : memref<16x128xf32, #tpu.memory_space<vmem>>, vector<1x128xf32>
      %96 = arith.addf %arg6, %95 : vector<1x128xf32>
      scf.yield %96 : vector<1x128xf32>
    }
    %c8_i32_22 = arith.constant 8 : i32
    %66 = arith.muli %arg0, %c8_i32_22 : i32
    %c6_i32 = arith.constant 6 : i32
    %67 = arith.addi %66, %c6_i32 : i32
    %68 = arith.index_cast %67 : i32 to index
    %69 = memref.load %arg1[%68] : memref<9xi32, #tpu.memory_space<smem>>
    %c1_i32_23 = arith.constant 1 : i32
    %70 = arith.addi %67, %c1_i32_23 : i32
    %71 = arith.index_cast %70 : i32 to index
    %72 = memref.load %arg1[%71] : memref<9xi32, #tpu.memory_space<smem>>
    %cst_24 = arith.constant 0.000000e+00 : f32
    %73 = vector.broadcast %cst_24 : f32 to vector<1x128xf32>
    %74 = arith.subi %72, %69 : i32
    %75 = arith.addi %69, %74 : i32
    %c1_i32_25 = arith.constant 1 : i32
    %76 = scf.for %arg5 = %69 to %75 step %c1_i32_25 iter_args(%arg6 = %73) -> (vector<1x128xf32>)  : i32 {
      %90 = arith.index_cast %arg5 : i32 to index
      %91 = memref.load %arg2[%90] : memref<8xi32, #tpu.memory_space<smem>>
      %c0_i32_31 = arith.constant 0 : i32
      %c9_i32 = arith.constant 9 : i32
      %92 = arith.maxsi %c0_i32_31, %91 : i32
      %93 = arith.minsi %c9_i32, %92 : i32
      %94 = arith.index_cast %93 : i32 to index
      %c0_32 = arith.constant 0 : index
      %95 = vector.load %arg3[%94, %c0_32] : memref<16x128xf32, #tpu.memory_space<vmem>>, vector<1x128xf32>
      %96 = arith.addf %arg6, %95 : vector<1x128xf32>
      scf.yield %96 : vector<1x128xf32>
    }
    %c8_i32_26 = arith.constant 8 : i32
    %77 = arith.muli %arg0, %c8_i32_26 : i32
    %c7_i32 = arith.constant 7 : i32
    %78 = arith.addi %77, %c7_i32 : i32
    %79 = arith.index_cast %78 : i32 to index
    %80 = memref.load %arg1[%79] : memref<9xi32, #tpu.memory_space<smem>>
    %c1_i32_27 = arith.constant 1 : i32
    %81 = arith.addi %78, %c1_i32_27 : i32
    %82 = arith.index_cast %81 : i32 to index
    %83 = memref.load %arg1[%82] : memref<9xi32, #tpu.memory_space<smem>>
    %cst_28 = arith.constant 0.000000e+00 : f32
    %84 = vector.broadcast %cst_28 : f32 to vector<1x128xf32>
    %85 = arith.subi %83, %80 : i32
    %86 = arith.addi %80, %85 : i32
    %c1_i32_29 = arith.constant 1 : i32
    %87 = scf.for %arg5 = %80 to %86 step %c1_i32_29 iter_args(%arg6 = %84) -> (vector<1x128xf32>)  : i32 {
      %90 = arith.index_cast %arg5 : i32 to index
      %91 = memref.load %arg2[%90] : memref<8xi32, #tpu.memory_space<smem>>
      %c0_i32_31 = arith.constant 0 : i32
      %c9_i32 = arith.constant 9 : i32
      %92 = arith.maxsi %c0_i32_31, %91 : i32
      %93 = arith.minsi %c9_i32, %92 : i32
      %94 = arith.index_cast %93 : i32 to index
      %c0_32 = arith.constant 0 : index
      %95 = vector.load %arg3[%94, %c0_32] : memref<16x128xf32, #tpu.memory_space<vmem>>, vector<1x128xf32>
      %96 = arith.addf %arg6, %95 : vector<1x128xf32>
      scf.yield %96 : vector<1x128xf32>
    }
    %88 = tpu.concatenate %10, %21, %32, %43, %54, %65, %76, %87 in 0 : vector<1x128xf32>, vector<1x128xf32>, vector<1x128xf32>, vector<1x128xf32>, vector<1x128xf32>, vector<1x128xf32>, vector<1x128xf32>, vector<1x128xf32> -> vector<8x128xf32>
    %c0 = arith.constant 0 : index
    %c0_30 = arith.constant 0 : index
    %89 = vector.load %arg4[%c0, %c0_30] : memref<8x128xf32, #tpu.memory_space<vmem>>, vector<8x128xf32>
    tpu.vector_store %arg4[%c0, %c0_30], %88 {strides = array<i32>} : memref<8x128xf32, #tpu.memory_space<vmem>>, vector<8x128xf32>,
    return
  }
  func.func @transform_0(%arg0: i32, %arg1: memref<9xi32, #tpu.memory_space<smem>>, %arg2: memref<8xi32, #tpu.memory_space<smem>>) -> (i32, i32) {
    %c0_i32 = arith.constant 0 : i32
    %c0_i32_0 = arith.constant 0 : i32
    %c0_i32_1 = arith.constant 0 : i32
    return %c0_i32, %c0_i32_0 : i32, i32
  }
  func.func @transform_1(%arg0: i32, %arg1: memref<9xi32, #tpu.memory_space<smem>>, %arg2: memref<8xi32, #tpu.memory_space<smem>>) -> (i32, i32) {
    %c0_i32 = arith.constant 0 : i32
    %c0_i32_0 = arith.constant 0 : i32
    return %arg0, %c0_i32 : i32, i32
  }
}

</mosaic_0001>

<llo_original>
// kernel: tpu_custom_call.1
$region0: #{tpu_custom_call.1}
  #allocation0 [shape = 'u32[]', space=smem, size = 0x4, offset = 0x4, fixed_abs, tag = 'smem constant byte address 0x4 - core index']
  #allocation1 [shape = 'u32[72,128]{1,0:T(1,128)}', space=vmem, size = 0x9000, scoped, tag = 'internal scratch']
  #allocation2 [shape = 's32[1]{0}', space=sflag, size = 0x4, scoped, tag = 'scoped memory for tpu_custom_call.1']
  #allocation3 [shape = 'u8[512]{0}', space=smem, size = 0x200, scoped, tag = 'prefetched SMEM operand 0']
  #allocation4 [shape = 'u8[512]{0}', space=smem, size = 0x200, scoped, tag = 'prefetched SMEM operand 1']
  %s0 = inlined_call_operand.hbm [shape: s32[9], index: 0, kind: input, shape index: {}]
  %s1 = inlined_call_operand.hbm [shape: s32[8], index: 1, kind: input, shape index: {}]
  %s2 = inlined_call_operand.hbm [shape: f32[16,128], index: 2, kind: input, shape index: {}]
  %s3 = inlined_call_operand.hbm [shape: f32[8,128], index: 3, kind: output, shape index: {}]
  %s4 = sld [smem:[#allocation0]]
  $region74: #{tpu_custom_call.1} parent=0
    _
  %s6 = ssub.s32 1, %s4
  %s7 = scalar_select 0, %s6, %s4
  %s9 = sshll.u32 %s0, 4
  %s10 = int_to_ptr.hbm [resolvable:$true] %s9
  %12 = dma.hbm_to_smem %s10, 16, [#allocation3], [#allocation2]
  %s14 = sshll.u32 %s1, 4
  %s15 = int_to_ptr.hbm [resolvable:$true] %s14
  %17 = dma.hbm_to_smem %s15, 16, [#allocation4], [#allocation2]
  %19 = dma.done [#allocation2], 32
  %20 = sfence
  $region1: #{tpu_custom_call.1} parent=0
    #allocation5 [shape = 'u8[8192]{0}', space=vmem, size = 0x2000, scoped, tag = 'input window, operand 2, single buffered']
    #allocation6 [shape = 's32[1]{0}', space=sflag, size = 0x4, scoped, tag = 'scoped memory for tpu_custom_call.1']
    #allocation7 [shape = 's32[1]{0}', space=sflag, size = 0x4, scoped, tag = 'scoped memory for tpu_custom_call.1']
    #allocation8 [shape = 'u8[4096]{0}', space=vmem, size = 0x1000, scoped, tag = 'output window, operand 0, single buffered']
    %21 = vsyncpa [#allocation6], 0
    %22 = vsyncpa [#allocation7], 0
    // Predicated region
    $region2: #{tpu_custom_call.1} parent=1 // pred_check
      _
    $region3: #{tpu_custom_call.1} parent=1 // pred_check_branch
      %24 = sbr.rel (0) target = $region5
    $region4: #{tpu_custom_call.1} parent=1 // pred_region
      %26 = vsyncadd [#allocation6], 0
      %s27 = sshll.u32 %s2, 4
      %s28 = int_to_ptr.hbm [resolvable:$true] %s27
      %s29 = sshll.u32 [#allocation5], 4
      %s30 = int_to_ptr.vmem [resolvable:$true] %s29
      %35 = dma.hbm_to_vmem [thread:$0]  %s28, 256, %s30, [#allocation6], 128, 128, 8
    $region5: #{tpu_custom_call.1} parent=1 // pred_fallthru
      _
    // Predicated region
    $region6: #{tpu_custom_call.1} parent=1 // pred_check
      _
    $region7: #{tpu_custom_call.1} parent=1 // pred_check_branch
      %37 = sbr.rel (0) target = $region9
    $region8: #{tpu_custom_call.1} parent=1 // pred_region
      %39 = dma.done [#allocation6], 256
    $region9: #{tpu_custom_call.1} parent=1 // pred_fallthru
      _
    %s40 = smul.u32 0, 8
    %s41 = sld [smem:[#allocation3 + %s40]]
    %s42 = sadd.s32 %s40, 1
    %s43 = sld [smem:[#allocation3 + %s42]]
    // While loop
    $region10: #{tpu_custom_call.1} parent=1 // loop_pre_header
      _
    $region11: #{tpu_custom_call.1} parent=1 // loop_header
      %s45 = sphi %s41, %s47
      %p46 = scmp.ge.s32.totalorder %s45, %s43
      %v50 = vphi 0.0, %v58
    $region12: #{tpu_custom_call.1} parent=1 // loop_header_branch
      %49 = sbr.rel (%p46) target = $region16
    $region13: #{tpu_custom_call.1} parent=1 // loop_body
      %s51 = sld [smem:[#allocation4 + %s45]]
      %p52 = scmp.gt.s32.totalorder %s51, 0
      %s53 = scalar_select %p52, %s51, 0
      %p54 = scmp.lt.s32.totalorder %s53, 9
      %s55 = scalar_select %p54, %s53, 9
      %s56 = scalar_lea.vmem [#allocation5], %s55
      %v57 = vld [vmem:[%s56] sm:$0x1]
      %v58 = vadd.f32 %v50, %v57
    $region14: #{tpu_custom_call.1} parent=1 // loop_footer
      %s47 = sadd.s32 %s45, 1
    $region15: #{tpu_custom_call.1} parent=1 // loop_footer_branch
      %44 = sbr.rel target = $region11
    $region16: #{tpu_custom_call.1} parent=1 // loop_exit
      _
    %s59 = sadd.s32 %s40, 2
    %s60 = sld [smem:[#allocation3 + %s59]]
    // While loop
    $region17: #{tpu_custom_call.1} parent=1 // loop_pre_header
      _
    $region18: #{tpu_custom_call.1} parent=1 // loop_header
      %s62 = sphi %s43, %s64
      %p63 = scmp.ge.s32.totalorder %s62, %s60
      %v67 = vphi 0.0, %v75
    $region19: #{tpu_custom_call.1} parent=1 // loop_header_branch
      %66 = sbr.rel (%p63) target = $region23
    $region20: #{tpu_custom_call.1} parent=1 // loop_body
      %s68 = sld [smem:[#allocation4 + %s62]]
      %p69 = scmp.gt.s32.totalorder %s68, 0
      %s70 = scalar_select %p69, %s68, 0
      %p71 = scmp.lt.s32.totalorder %s70, 9
      %s72 = scalar_select %p71, %s70, 9
      %s73 = scalar_lea.vmem [#allocation5], %s72
      %v74 = vld [vmem:[%s73] sm:$0x1]
      %v75 = vadd.f32 %v67, %v74
    $region21: #{tpu_custom_call.1} parent=1 // loop_footer
      %s64 = sadd.s32 %s62, 1
    $region22: #{tpu_custom_call.1} parent=1 // loop_footer_branch
      %61 = sbr.rel target = $region18
    $region23: #{tpu_custom_call.1} parent=1 // loop_exit
      _
    %s76 = sadd.s32 %s40, 3
    %s77 = sld [smem:[#allocation3 + %s76]]
    // While loop
    $region24: #{tpu_custom_call.1} parent=1 // loop_pre_header
      _
    $region25: #{tpu_custom_call.1} parent=1 // loop_header
      %s79 = sphi %s60, %s81
      %p80 = scmp.ge.s32.totalorder %s79, %s77
      %v84 = vphi 0.0, %v92
    $region26: #{tpu_custom_call.1} parent=1 // loop_header_branch
      %83 = sbr.rel (%p80) target = $region30
    $region27: #{tpu_custom_call.1} parent=1 // loop_body
      %s85 = sld [smem:[#allocation4 + %s79]]
      %p86 = scmp.gt.s32.totalorder %s85, 0
      %s87 = scalar_select %p86, %s85, 0
      %p88 = scmp.lt.s32.totalorder %s87, 9
      %s89 = scalar_select %p88, %s87, 9
      %s90 = scalar_lea.vmem [#allocation5], %s89
      %v91 = vld [vmem:[%s90] sm:$0x1]
      %v92 = vadd.f32 %v84, %v91
    $region28: #{tpu_custom_call.1} parent=1 // loop_footer
      %s81 = sadd.s32 %s79, 1
    $region29: #{tpu_custom_call.1} parent=1 // loop_footer_branch
      %78 = sbr.rel target = $region25
    $region30: #{tpu_custom_call.1} parent=1 // loop_exit
      _
    %s93 = sadd.s32 %s40, 4
    %s94 = sld [smem:[#allocation3 + %s93]]
    // While loop
    $region31: #{tpu_custom_call.1} parent=1 // loop_pre_header
      _
    $region32: #{tpu_custom_call.1} parent=1 // loop_header
      %s96 = sphi %s77, %s98
      %p97 = scmp.ge.s32.totalorder %s96, %s94
      %v101 = vphi 0.0, %v109
    $region33: #{tpu_custom_call.1} parent=1 // loop_header_branch
      %100 = sbr.rel (%p97) target = $region37
    $region34: #{tpu_custom_call.1} parent=1 // loop_body
      %s102 = sld [smem:[#allocation4 + %s96]]
      %p103 = scmp.gt.s32.totalorder %s102, 0
      %s104 = scalar_select %p103, %s102, 0
      %p105 = scmp.lt.s32.totalorder %s104, 9
      %s106 = scalar_select %p105, %s104, 9
      %s107 = scalar_lea.vmem [#allocation5], %s106
      %v108 = vld [vmem:[%s107] sm:$0x1]
      %v109 = vadd.f32 %v101, %v108
    $region35: #{tpu_custom_call.1} parent=1 // loop_footer
      %s98 = sadd.s32 %s96, 1
    $region36: #{tpu_custom_call.1} parent=1 // loop_footer_branch
      %95 = sbr.rel target = $region32
    $region37: #{tpu_custom_call.1} parent=1 // loop_exit
      _
    %s110 = sadd.s32 %s40, 5
    %s111 = sld [smem:[#allocation3 + %s110]]
    // While loop
    $region38: #{tpu_custom_call.1} parent=1 // loop_pre_header
      _
    $region39: #{tpu_custom_call.1} parent=1 // loop_header
      %s113 = sphi %s94, %s115
      %p114 = scmp.ge.s32.totalorder %s113, %s111
      %v118 = vphi 0.0, %v126
    $region40: #{tpu_custom_call.1} parent=1 // loop_header_branch
      %117 = sbr.rel (%p114) target = $region44
    $region41: #{tpu_custom_call.1} parent=1 // loop_body
      %s119 = sld [smem:[#allocation4 + %s113]]
      %p120 = scmp.gt.s32.totalorder %s119, 0
      %s121 = scalar_select %p120, %s119, 0
      %p122 = scmp.lt.s32.totalorder %s121, 9
      %s123 = scalar_select %p122, %s121, 9
      %s124 = scalar_lea.vmem [#allocation5], %s123
      %v125 = vld [vmem:[%s124] sm:$0x1]
      %v126 = vadd.f32 %v118, %v125
    $region42: #{tpu_custom_call.1} parent=1 // loop_footer
      %s115 = sadd.s32 %s113, 1
    $region43: #{tpu_custom_call.1} parent=1 // loop_footer_branch
      %112 = sbr.rel target = $region39
    $region44: #{tpu_custom_call.1} parent=1 // loop_exit
      _
    %s127 = sadd.s32 %s40, 6
    %s128 = sld [smem:[#allocation3 + %s127]]
    // While loop
    $region45: #{tpu_custom_call.1} parent=1 // loop_pre_header
      _
    $region46: #{tpu_custom_call.1} parent=1 // loop_header
      %s130 = sphi %s111, %s132
      %p131 = scmp.ge.s32.totalorder %s130, %s128
      %v135 = vphi 0.0, %v143
    $region47: #{tpu_custom_call.1} parent=1 // loop_header_branch
      %134 = sbr.rel (%p131) target = $region51
    $region48: #{tpu_custom_call.1} parent=1 // loop_body
      %s136 = sld [smem:[#allocation4 + %s130]]
      %p137 = scmp.gt.s32.totalorder %s136, 0
      %s138 = scalar_select %p137, %s136, 0
      %p139 = scmp.lt.s32.totalorder %s138, 9
      %s140 = scalar_select %p139, %s138, 9
      %s141 = scalar_lea.vmem [#allocation5], %s140
      %v142 = vld [vmem:[%s141] sm:$0x1]
      %v143 = vadd.f32 %v135, %v142
    $region49: #{tpu_custom_call.1} parent=1 // loop_footer
      %s132 = sadd.s32 %s130, 1
    $region50: #{tpu_custom_call.1} parent=1 // loop_footer_branch
      %129 = sbr.rel target = $region46
    $region51: #{tpu_custom_call.1} parent=1 // loop_exit
      _
    %s144 = sadd.s32 %s40, 7
    %s145 = sld [smem:[#allocation3 + %s144]]
    // While loop
    $region52: #{tpu_custom_call.1} parent=1 // loop_pre_header
      _
    $region53: #{tpu_custom_call.1} parent=1 // loop_header
      %s147 = sphi %s128, %s149
      %p148 = scmp.ge.s32.totalorder %s147, %s145
      %v152 = vphi 0.0, %v160
    $region54: #{tpu_custom_call.1} parent=1 // loop_header_branch
      %151 = sbr.rel (%p148) target = $region58
    $region55: #{tpu_custom_call.1} parent=1 // loop_body
      %s153 = sld [smem:[#allocation4 + %s147]]
      %p154 = scmp.gt.s32.totalorder %s153, 0
      %s155 = scalar_select %p154, %s153, 0
      %p156 = scmp.lt.s32.totalorder %s155, 9
      %s157 = scalar_select %p156, %s155, 9
      %s158 = scalar_lea.vmem [#allocation5], %s157
      %v159 = vld [vmem:[%s158] sm:$0x1]
      %v160 = vadd.f32 %v152, %v159
    $region56: #{tpu_custom_call.1} parent=1 // loop_footer
      %s149 = sadd.s32 %s147, 1
    $region57: #{tpu_custom_call.1} parent=1 // loop_footer_branch
      %146 = sbr.rel target = $region53
    $region58: #{tpu_custom_call.1} parent=1 // loop_exit
      _
    %s161 = sadd.s32 %s40, 8
    %s162 = sld [smem:[#allocation3 + %s161]]
    // While loop
    $region59: #{tpu_custom_call.1} parent=1 // loop_pre_header
      _
    $region60: #{tpu_custom_call.1} parent=1 // loop_header
      %s164 = sphi %s145, %s166
      %p165 = scmp.ge.s32.totalorder %s164, %s162
      %v169 = vphi 0.0, %v177
    $region61: #{tpu_custom_call.1} parent=1 // loop_header_branch
      %168 = sbr.rel (%p165) target = $region65
    $region62: #{tpu_custom_call.1} parent=1 // loop_body
      %s170 = sld [smem:[#allocation4 + %s164]]
      %p171 = scmp.gt.s32.totalorder %s170, 0
      %s172 = scalar_select %p171, %s170, 0
      %p173 = scmp.lt.s32.totalorder %s172, 9
      %s174 = scalar_select %p173, %s172, 9
      %s175 = scalar_lea.vmem [#allocation5], %s174
      %v176 = vld [vmem:[%s175] sm:$0x1]
      %v177 = vadd.f32 %v169, %v176
    $region63: #{tpu_custom_call.1} parent=1 // loop_footer
      %s166 = sadd.s32 %s164, 1
    $region64: #{tpu_custom_call.1} parent=1 // loop_footer_branch
      %163 = sbr.rel target = $region60
    $region65: #{tpu_custom_call.1} parent=1 // loop_exit
      _
    %v179 = vrot.slane %v67, 7
    %v182 = vrot.slane %v84, 6
    %v185 = vrot.slane %v101, 5
    %v188 = vrot.slane %v118, 4
    %v191 = vrot.slane %v135, 3
    %v194 = vrot.slane %v152, 2
    %v197 = vrot.slane %v169, 1
    %vm199 = vcmask 1040384
    %v200 = vsel %vm199, %v50, %v179
    %vm201 = vcmask 1041408
    %v202 = vsel %vm201, %v200, %v182
    %vm203 = vcmask 1042432
    %v204 = vsel %vm203, %v202, %v185
    %vm205 = vcmask 1043456
    %v206 = vsel %vm205, %v204, %v188
    %vm207 = vcmask 1044480
    %v208 = vsel %vm207, %v206, %v191
    %vm209 = vcmask 1045504
    %v210 = vsel %vm209, %v208, %v194
    %vm211 = vcmask 1046528
    %v212 = vsel %vm211, %v210, %v197
    %213 = vst [vmem:[#allocation8] sm:$0xff] %v212
    // Predicated region
    $region66: #{tpu_custom_call.1} parent=1 // pred_check
      _
    $region67: #{tpu_custom_call.1} parent=1 // pred_check_branch
      %215 = sbr.rel (0) target = $region69
    $region68: #{tpu_custom_call.1} parent=1 // pred_region
      %217 = vsyncadd [#allocation7], 0
      %s219 = sshll.u32 [#allocation8], 4
      %s220 = int_to_ptr.vmem [resolvable:$true] %s219
      %s221 = sshll.u32 %s3, 4
      %s222 = int_to_ptr.hbm [resolvable:$true] %s221
      %224 = dma.vmem_to_hbm [thread:$0]  %s220, 128, %s222, [#allocation7]
    $region69: #{tpu_custom_call.1} parent=1 // pred_fallthru
      _
    // Predicated region
    $region70: #{tpu_custom_call.1} parent=1 // pred_check
      _
    $region71: #{tpu_custom_call.1} parent=1 // pred_check_branch
      %226 = sbr.rel (0) target = $region73
    $region72: #{tpu_custom_call.1} parent=1 // pred_region
      %228 = dma.done [#allocation7], 128
    $region73: #{tpu_custom_call.1} parent=1 // pred_fallthru
      _
    %229 = vsyncpa [#allocation6], 1
    %230 = vsyncpa [#allocation7], 1

</llo_original>
